<compile_context>
chip_gen: v5e
topology: v5e:2x2
jax: 0.10.0
libtpu: 0.0.40
codegen_flags: <defaults>
</compile_context>

<pallas_src>
import functools
import math

import jax
import jax.numpy as jnp
from jax import lax
from jax.experimental import pallas as pl
from jax.experimental.pallas import tpu as pltpu


def make_sinusoidal_pe(max_len: int, d_model: int, dtype=jnp.float32):
    """Deterministic buffer setup (matches nn.Module.__init__)."""
    position = jnp.arange(max_len, dtype=jnp.float32)[:, None]            # (max_len, 1)
    div_term = jnp.exp(
        jnp.arange(0, d_model, 2, dtype=jnp.float32) * (-math.log(10000.0) / d_model)
    )                                                                      # (d_model//2,)
    ang = position * div_term                                              # (max_len, d_model//2)
    pe = jnp.zeros((max_len, 1, d_model), dtype=jnp.float32)
    pe = pe.at[:, 0, 0::2].set(jnp.sin(ang))
    pe = pe.at[:, 0, 1::2].set(jnp.cos(ang))
    return pe.astype(dtype)


def _pe_dropout_kernel(seed_ref, x_ref, pe_ref, o_ref, *, p: float, training: bool, ts: int):
    # x_ref: (TS, B, D), pe_ref: (TS, 1, D) -> broadcast add over the batch axis.
    y = x_ref[...] + pe_ref[...]

    if training and p > 0.0:
        # Inverted dropout with a counter-based hash PRNG (stateless, tile-invariant).
        # TODO(synk): torch.nn.Dropout RNG stream cannot be reproduced bit-exactly;
        # this is statistically equivalent (24-bit uniform threshold test).
        tsb, B, D = y.shape
        row = lax.broadcasted_iota(jnp.int32, (tsb, B, D), 0) + pl.program_id(0) * ts
        col = lax.broadcasted_iota(jnp.int32, (tsb, B, D), 1)
        dep = lax.broadcasted_iota(jnp.int32, (tsb, B, D), 2)
        flat = (row * B + col) * D + dep                                   # global element id

        seed_u = seed_ref[0].astype(jnp.uint32)
        h = flat.astype(jnp.uint32) ^ (seed_u * jnp.uint32(0x9E3779B9))
        # lowbias32-style mix
        h = h ^ (h >> jnp.uint32(16))
        h = h * jnp.uint32(0x7FEB352D)
        h = h ^ (h >> jnp.uint32(15))
        h = h * jnp.uint32(0x846CA68B)
        h = h ^ (h >> jnp.uint32(16))

        # keep iff top-24 random bits >= floor(p * 2^24)  (integer compare, no f32 temps)
        thresh = jnp.uint32(min(int(p * float(1 << 24)), (1 << 24) - 1))
        keep = (h >> jnp.uint32(8)) >= thresh
        scale = jnp.asarray(1.0 / (1.0 - p), dtype=y.dtype)
        y = jnp.where(keep, y * scale, jnp.zeros_like(y))

    o_ref[...] = y.astype(o_ref.dtype)


def positional_encoding_forward(x, pe, *, p: float = 0.1, training: bool = False, seed: int = 0):
    """x: (S, B, D); pe: (max_len, 1, D). Returns dropout(x + pe[:S])."""
    S, B, D = x.shape
    max_len = pe.shape[0]
    assert S <= max_len, "sequence length exceeds positional-encoding buffer"

    # Tile the sequence axis; target ~4 MiB per x tile so double-buffered
    # (x, pe, out) stays well under the scoped-VMEM limit on every generation
    # (v5e 16 MiB default raised below, v7x 64 MiB physical).
    itemsize = jnp.dtype(x.dtype).itemsize
    bytes_per_row = max(B * D * itemsize, 1)
    target_bytes = 4 * 1024 * 1024
    ts = max(1, min(S, target_bytes // bytes_per_row))
    if ts >= 8:
        ts = (ts // 8) * 8          # sublane-friendly row count
    grid = (pl.cdiv(S, ts),)

    seed_arr = jnp.asarray([seed], dtype=jnp.int32)   # scalar-prefetch arg (SMEM)
    kernel = functools.partial(
        _pe_dropout_kernel, p=float(p), training=bool(training), ts=ts
    )

    return pl.pallas_call(
        kernel,
        out_shape=jax.ShapeDtypeStruct((S, B, D), x.dtype),
        grid_spec=pltpu.PrefetchScalarGridSpec(
            num_scalar_prefetch=1,
            grid=grid,
            in_specs=[
                # x: stream (ts, B, D) row-tiles
                pl.BlockSpec((ts, B, D), lambda i, seed: (i, 0, 0)),
                # pe: select the matching rows straight out of the full (max_len,1,D) buffer
                pl.BlockSpec((ts, 1, D), lambda i, seed: (i, 0, 0)),
            ],
            out_specs=pl.BlockSpec((ts, B, D), lambda i, seed: (i, 0, 0)),
        ),
        compiler_params=pltpu.CompilerParams(
            dimension_semantics=("parallel",),          # shard S-tiles across v7x's 2 TCs
            vmem_limit_bytes=32 * 1024 * 1024,
        ),
    )(seed_arr, x, pe)


if __name__ == "__main__":
    seq_len, batch, d_model = 8, 2, 32
    max_len = 64  # small stand-in for 5000 (only pe[:seq_len] is used)

    key = jax.random.PRNGKey(0)
    x = jax.random.normal(key, (seq_len, batch, d_model), dtype=jnp.float32)
    pe = make_sinusoidal_pe(max_len, d_model)

    # Eval mode (dropout = identity): exact semantics vs pure-JAX reference.
    out_eval = positional_encoding_forward(x, pe, p=0.1, training=False)
    out_eval = jax.block_until_ready(out_eval)
    ref = x + pe[:seq_len]
    assert out_eval.shape == (seq_len, batch, d_model)
    assert jnp.allclose(out_eval, ref, atol=1e-6), "eval-mode mismatch vs reference"

    # Training mode: every output element must be 0 (dropped) or ref / (1-p) (kept).
    p = 0.1
    out_train = positional_encoding_forward(x, pe, p=p, training=True, seed=123)
    out_train = jax.block_until_ready(out_train)
    scaled = ref / (1.0 - p)
    ok = jnp.isclose(out_train, 0.0, atol=1e-6) | jnp.isclose(out_train, scaled, atol=1e-5)
    assert bool(jnp.all(ok)), "training-mode dropout produced unexpected values"

    print("KERNEL_OK")
</pallas_src>

<mosaic_0001>
module attributes {stable_mosaic.version = 11 : i64} {
  func.func @_pe_dropout_kernel(%arg0: i32, %arg1: memref<1xi32, #tpu.memory_space<smem>>, %arg2: memref<8x2x32xf32, #tpu.memory_space<vmem>>, %arg3: memref<8x1x32xf32, #tpu.memory_space<vmem>>, %arg4: memref<8x2x32xf32, #tpu.memory_space<vmem>>) attributes {dimension_semantics = [#tpu.dimension_semantics<parallel>], iteration_bounds = array<i64: 1>, scalar_prefetch = 1 : i64, scratch_operands = 0 : i64, tpu.core_type = #tpu.core_type<tc>, window_params = [{transform_indices = @transform_0, window_bounds = array<i64: 8, 2, 32>}, {transform_indices = @transform_1, window_bounds = array<i64: 8, 1, 32>}, {transform_indices = @transform_2, window_bounds = array<i64: 8, 2, 32>}]} {
    %c0 = arith.constant 0 : index
    %c0_0 = arith.constant 0 : index
    %c0_1 = arith.constant 0 : index
    %0 = vector.load %arg2[%c0, %c0_0, %c0_1] : memref<8x2x32xf32, #tpu.memory_space<vmem>>, vector<8x2x32xf32>
    %c0_2 = arith.constant 0 : index
    %c0_3 = arith.constant 0 : index
    %c0_4 = arith.constant 0 : index
    %1 = vector.load %arg3[%c0_2, %c0_3, %c0_4] : memref<8x1x32xf32, #tpu.memory_space<vmem>>, vector<8x1x32xf32>
    %2 = vector.broadcast %1 : vector<8x1x32xf32> to vector<8x2x32xf32>
    %3 = arith.addf %0, %2 : vector<8x2x32xf32>
    %c0_5 = arith.constant 0 : index
    %c0_6 = arith.constant 0 : index
    %c0_7 = arith.constant 0 : index
    %4 = vector.load %arg4[%c0_5, %c0_6, %c0_7] : memref<8x2x32xf32, #tpu.memory_space<vmem>>, vector<8x2x32xf32>
    tpu.vector_store %arg4[%c0_5, %c0_6, %c0_7], %3 {strides = array<i32>} : memref<8x2x32xf32, #tpu.memory_space<vmem>>, vector<8x2x32xf32>,
    return
  }
  func.func @transform_0(%arg0: i32, %arg1: memref<1xi32, #tpu.memory_space<smem>>) -> (i32, i32, i32) {
    %c0_i32 = arith.constant 0 : i32
    %c0_i32_0 = arith.constant 0 : i32
    %c0_i32_1 = arith.constant 0 : i32
    return %arg0, %c0_i32, %c0_i32_0 : i32, i32, i32
  }
  func.func @transform_1(%arg0: i32, %arg1: memref<1xi32, #tpu.memory_space<smem>>) -> (i32, i32, i32) {
    %c0_i32 = arith.constant 0 : i32
    %c0_i32_0 = arith.constant 0 : i32
    %c0_i32_1 = arith.constant 0 : i32
    return %arg0, %c0_i32, %c0_i32_0 : i32, i32, i32
  }
  func.func @transform_2(%arg0: i32, %arg1: memref<1xi32, #tpu.memory_space<smem>>) -> (i32, i32, i32) {
    %c0_i32 = arith.constant 0 : i32
    %c0_i32_0 = arith.constant 0 : i32
    %c0_i32_1 = arith.constant 0 : i32
    return %arg0, %c0_i32, %c0_i32_0 : i32, i32, i32
  }
}

</mosaic_0001>

<llo_original>
// kernel: tpu_custom_call.1
$region0: #{tpu_custom_call.1}
  #allocation0 [shape = 'u32[]', space=smem, size = 0x4, offset = 0x4, fixed_abs, tag = 'smem constant byte address 0x4 - core index']
  #allocation1 [shape = 'u32[72,128]{1,0:T(1,128)}', space=vmem, size = 0x9000, scoped, tag = 'internal scratch']
  #allocation2 [shape = 's32[1]{0}', space=sflag, size = 0x4, scoped, tag = 'scoped memory for tpu_custom_call.1']
  #allocation3 [shape = 's32[1]{0:T(128)S(6)}', space=smem, size = 0x200, scoped, tag = 'prefetched SMEM operand 0']
  %s0 = inlined_call_operand.<no memory space> [shape: s32[1], index: 0, kind: input, shape index: {}]
  %s1 = inlined_call_operand.vmem [shape: f32[8,2,32], index: 1, kind: input, shape index: {}]
  %s2 = inlined_call_operand.vmem [shape: f32[64,1,32], index: 2, kind: input, shape index: {}]
  %s3 = inlined_call_operand.hbm [shape: f32[8,2,32], index: 3, kind: output, shape index: {}]
  %s4 = sld [smem:[#allocation0]]
  $region18: #{tpu_custom_call.1} parent=0
    _
  %s6 = ssub.s32 1, %s4
  %s7 = scalar_select 0, %s6, %s4
  %8 = sst [smem:[#allocation3]] %s0
  $region1: #{tpu_custom_call.1} parent=0
    #allocation4 [shape = 'u8[8192]{0}', space=vmem, size = 0x2000, scoped, tag = 'output window, operand 0, single buffered']
    #allocation5 [shape = 's32[1]{0}', space=sflag, size = 0x4, scoped, tag = 'scoped memory for tpu_custom_call.1']
    %9 = vsyncpa [#allocation5], 0
    // Predicated region
    $region2: #{tpu_custom_call.1} parent=1 // pred_check
      _
    $region3: #{tpu_custom_call.1} parent=1 // pred_check_branch
      %11 = sbr.rel (0) target = $region5
    $region4: #{tpu_custom_call.1} parent=1 // pred_region
      _
    $region5: #{tpu_custom_call.1} parent=1 // pred_fallthru
      _
    // Predicated region
    $region6: #{tpu_custom_call.1} parent=1 // pred_check
      _
    $region7: #{tpu_custom_call.1} parent=1 // pred_check_branch
      %13 = sbr.rel (0) target = $region9
    $region8: #{tpu_custom_call.1} parent=1 // pred_region
      _
    $region9: #{tpu_custom_call.1} parent=1 // pred_fallthru
      _
    %v14 = vld [vmem:[%s1] sm:$0x3]
    %v15 = vld [vmem:[%s1 + $0x2] sm:$0x3]
    %v16 = vld [vmem:[%s1 + $0x4] sm:$0x3]
    %v17 = vld [vmem:[%s1 + $0x6] sm:$0x3]
    %v18 = vld [vmem:[%s1 + $0x8] sm:$0x3]
    %v19 = vld [vmem:[%s1 + $0xa] sm:$0x3]
    %v20 = vld [vmem:[%s1 + $0xc] sm:$0x3]
    %v21 = vld [vmem:[%s1 + $0xe] sm:$0x3]
    %v22 = vld [vmem:[%s2] sm:$0x1]
    %v23 = vld [vmem:[%s2 + $0x1] sm:$0x1]
    %v24 = vld [vmem:[%s2 + $0x2] sm:$0x1]
    %v25 = vld [vmem:[%s2 + $0x3] sm:$0x1]
    %v26 = vld [vmem:[%s2 + $0x4] sm:$0x1]
    %v27 = vld [vmem:[%s2 + $0x5] sm:$0x1]
    %v28 = vld [vmem:[%s2 + $0x6] sm:$0x1]
    %v29 = vld [vmem:[%s2 + $0x7] sm:$0x1]
    %v38 = vperm.slane %v22, 0
    %v39 = vperm.slane %v23, 0
    %v40 = vperm.slane %v24, 0
    %v41 = vperm.slane %v25, 0
    %v42 = vperm.slane %v26, 0
    %v43 = vperm.slane %v27, 0
    %v44 = vperm.slane %v28, 0
    %v45 = vperm.slane %v29, 0
    %v54 = vadd.f32 %v14, %v38
    %v55 = vadd.f32 %v15, %v39
    %v56 = vadd.f32 %v16, %v40
    %v57 = vadd.f32 %v17, %v41
    %v58 = vadd.f32 %v18, %v42
    %v59 = vadd.f32 %v19, %v43
    %v60 = vadd.f32 %v20, %v44
    %v61 = vadd.f32 %v21, %v45
    %vm62 = vcmask 254976
    %63 = vst.msk [vmem:[#allocation4] sm:$0x3] %vm62, %v54
    %64 = vst.msk [vmem:[#allocation4 + $0x2] sm:$0x3] %vm62, %v55
    %65 = vst.msk [vmem:[#allocation4 + $0x4] sm:$0x3] %vm62, %v56
    %66 = vst.msk [vmem:[#allocation4 + $0x6] sm:$0x3] %vm62, %v57
    %67 = vst.msk [vmem:[#allocation4 + $0x8] sm:$0x3] %vm62, %v58
    %68 = vst.msk [vmem:[#allocation4 + $0xa] sm:$0x3] %vm62, %v59
    %69 = vst.msk [vmem:[#allocation4 + $0xc] sm:$0x3] %vm62, %v60
    %70 = vst.msk [vmem:[#allocation4 + $0xe] sm:$0x3] %vm62, %v61
    // Predicated region
    $region10: #{tpu_custom_call.1} parent=1 // pred_check
      _
    $region11: #{tpu_custom_call.1} parent=1 // pred_check_branch
      %72 = sbr.rel (0) target = $region13
    $region12: #{tpu_custom_call.1} parent=1 // pred_region
      %74 = vsyncadd [#allocation5], 0
      %s75 = sshll.u32 [#allocation4], 4
      %s76 = int_to_ptr.vmem [resolvable:$true] %s75
      %s77 = sshll.u32 %s3, 4
      %s78 = int_to_ptr.hbm [resolvable:$true] %s77
      %83 = dma.vmem_to_hbm [thread:$0]  %s76, 256, %s78, [#allocation5], 32, 32, 2
    $region13: #{tpu_custom_call.1} parent=1 // pred_fallthru
      _
    // Predicated region
    $region14: #{tpu_custom_call.1} parent=1 // pred_check
      _
    $region15: #{tpu_custom_call.1} parent=1 // pred_check_branch
      %85 = sbr.rel (0) target = $region17
    $region16: #{tpu_custom_call.1} parent=1 // pred_region
      %87 = dma.done [#allocation5], 256
    $region17: #{tpu_custom_call.1} parent=1 // pred_fallthru
      _
    %88 = vsyncpa [#allocation5], 1

</llo_original>
